<compile_context>
chip_gen: v7x
topology: tpu7x:2x2x1
jax: 0.10.0
libtpu: 0.0.40
codegen_flags: <defaults>
</compile_context>

<pallas_src>
import functools
from typing import NamedTuple

import jax
import jax.numpy as jnp
from jax.experimental import pallas as pl
from jax.experimental.pallas import tpu as pltpu


_VMEM_BUDGET = 40 * 1024 * 1024     # block-sizing budget; safe under v7x 64 MiB physical
_VMEM_LIMIT_CAP = 48 * 1024 * 1024  # never request more scoped VMEM than this
_MAX_BLOCK_ROWS = 4096              # diminishing returns beyond this


class PackedParams(NamedTuple):
    wbd: jax.Array     # (T*c_in, T*d)     block-diagonal V_w^T        (bf16 or f32)
    vb_t: jax.Array    # (1, T*d)          V_b tiled across tiles      (f32)
    rw: jax.Array      # (T*d, T)          block-diagonal w_w columns  (f32)
    wb: jax.Array      # (1,)              w_b scalar (SMEM)           (f32)
    expand: jax.Array  # (T, T*c_in)       attn -> per-feature bcast   (f32)
    fcw_t: jax.Array   # (T*c_in, c_out_p) fc_w^T tiled + lane-padded  (f32)
    fcb: jax.Array     # (1, c_out_p)      fc bias, lane-padded        (f32)


def _attention_head_kernel(x_ref, wbd_ref, vbt_ref, rw_ref, wb_ref,
                           expand_ref, fcw_ref, fcb_ref, out_ref):
    # x_ref: (B, T*c_in) lane-dense slab (bf16 or f32).
    xm = x_ref[...]

    # key for all tiles at once: (B, T*c_in) @ block-diag(V_w^T) -> (B, T*d).
    key = jnp.dot(xm, wbd_ref[...],
                  preferred_element_type=jnp.float32) + vbt_ref[...]
    t = jnp.tanh(key)                                          # EUP, full-lane vregs

    # logits[b, t] = <tanh(key_t), w_w> + w_b  via block-diag reduce matrix.
    logits = (jnp.dot(t, rw_ref[...], preferred_element_type=jnp.float32)
              + wb_ref[0])                                     # (B, T)

    # softmax over the tile axis (== last/lane axis -> cheap lane reduces).
    m = jnp.max(logits, axis=-1, keepdims=True)
    e = jnp.exp(logits - m)
    denom = jnp.sum(e, axis=-1, keepdims=True)
    attn = e * pl.reciprocal(denom, approx=True)               # EUP vrcp (idle slot)

    # pooled + fc fused:
    #   attn_rep[b, t*c_in + c] = attn[b, t]   (tiny (B,T)x(T,T*c_in) MXU matmul)
    #   out = (attn_rep * x) @ tile(fc_w^T, T) + fc_b
    attn_rep = jnp.dot(attn, expand_ref[...], preferred_element_type=jnp.float32)
    weighted = attn_rep * xm.astype(jnp.float32)   # upcast x once (v5e: no bf16 VPU)
    out_ref[...] = (jnp.dot(weighted, fcw_ref[...],
                            preferred_element_type=jnp.float32)
                    + fcb_ref[...])


def prepare_params(params, n_tiles, use_bf16=True):
    """One-time host-side weight packing (hoisted out of the per-call path)."""
    vw, vb, ww, wb, fcw, fcb = params
    d, c_in = vw.shape
    c_out = fcw.shape[0]
    T = n_tiles
    mm_dtype = jnp.bfloat16 if use_bf16 else jnp.float32
    eye = jnp.eye(T, dtype=jnp.float32)

    # Block-diagonal V_w^T: applies lin_V to all tiles of a batch row at once,
    # keeping the key/tanh intermediates lane-dense (T*d lanes instead of d).
    # TODO(synk): for large c_in/d (>=128) skip this densification and fall back
    # to a plain per-tile (B*T, c_in) x (c_in, d) matmul.
    wbd = jnp.kron(eye, vw.T.astype(jnp.float32)).astype(mm_dtype)   # (T*c_in, T*d)
    vb_t = jnp.tile(vb.astype(jnp.float32), T).reshape(1, T * d)
    # Block-diagonal w_w: tanh(key) @ rw == per-tile <tanh(key_t), w_w>.
    rw = jnp.kron(eye, ww.reshape(d, 1).astype(jnp.float32))          # (T*d, T)
    wb1 = wb.reshape(1).astype(jnp.float32)
    # attn (B,T) @ expand -> (B, T*c_in): broadcast attn over each tile's feats.
    expand = jnp.kron(eye, jnp.ones((1, c_in), jnp.float32))          # (T, T*c_in)
    # fc_w^T tiled T times (fuses the tile-sum of pooled into the fc matmul),
    # lane-padded so the output slab is a multiple of 128 lanes wide.
    c_out_p = -(-c_out // 128) * 128
    fcw_t1 = jnp.zeros((c_in, c_out_p), jnp.float32).at[:, :c_out].set(
        fcw.T.astype(jnp.float32))
    fcw_t = jnp.tile(fcw_t1, (T, 1))                                  # (T*c_in, c_out_p)
    fcb2 = jnp.zeros((1, c_out_p), jnp.float32).at[:, :c_out].set(
        fcb.reshape(1, c_out).astype(jnp.float32))
    return PackedParams(wbd, vb_t, rw, wb1, expand, fcw_t, fcb2)


def _choose_batch_block(b, x_row_bytes, out_row_bytes, weight_bytes):
    per_row = 2 * (x_row_bytes + out_row_bytes)            # double-buffered x + out slabs
    avail = _VMEM_BUDGET - 2 * weight_bytes - (4 << 20)    # headroom for compiler scratch
    max_rows = max((avail // per_row) // 8 * 8, 8)
    b8 = -(-b // 8) * 8
    if b8 <= max_rows:
        if b8 >= 2048:
            # Big batch: keep exactly 2 blocks so the "parallel" grid axis can
            # shard across v7x's two TensorCores, while still amortizing the
            # ~600-cycle per-grid-step overhead. v5e/v6e just run both blocks.
            return -(-(b8 // 2) // 8) * 8
        return b8      # whole batch in one block: zero extra grid steps
    return min(max_rows, _MAX_BLOCK_ROWS)


@functools.partial(jax.jit, static_argnames=("c_out",))
def attention_head_forward(x, packed: PackedParams, *, c_out: int):
    """x: (b * n_tiles, c_in) float32. Returns (b, c_out) float32."""
    T = packed.expand.shape[0]
    tc = packed.expand.shape[1]            # T * c_in
    c_in = tc // T
    td = packed.rw.shape[0]                # T * d
    c_out_p = packed.fcw_t.shape[1]
    mm_dtype = packed.wbd.dtype

    bn, c = x.shape
    assert c == c_in, f"expected c_in={c_in}, got {c}"
    assert bn % T == 0, "leading dim of x must be a multiple of n_tiles"
    b = bn // T

    # (b*T, c_in) -> (b, T*c_in): row-major, layout-identical, free.
    x_flat = x.reshape(b, tc).astype(mm_dtype)

    x_row_bytes = tc * x_flat.dtype.itemsize
    out_row_bytes = c_out_p * 4
    weight_bytes = sum(int(a.size) * a.dtype.itemsize
                       for a in (packed.wbd, packed.vb_t, packed.rw,
                                 packed.expand, packed.fcw_t, packed.fcb))
    b_blk = _choose_batch_block(b, x_row_bytes, out_row_bytes, weight_bytes)
    n_blk = -(-b // b_blk)
    b_pad = n_blk * b_blk
    if b_pad != b:
        # Zero-padded tail rows produce out == fc_b (uniform softmax over zero x)
        # and are sliced away below. Keep the padding value at zero.
        x_flat = jnp.pad(x_flat, ((0, b_pad - b), (0, 0)))

    # Scoped-VMEM request derived from actual block sizes (double-buffered),
    # capped well under v7x's 64 MiB physical VMEM.
    vmem_needed = (2 * b_blk * (x_row_bytes + out_row_bytes)
                   + 2 * weight_bytes + (4 << 20))
    vmem_limit = int(min(max(vmem_needed, 16 << 20), _VMEM_LIMIT_CAP))

    grid_spec = pltpu.PrefetchScalarGridSpec(
        num_scalar_prefetch=0,
        grid=(n_blk,),
        in_specs=[
            pl.BlockSpec((b_blk, tc), lambda i: (i, 0)),        # x slab
            pl.BlockSpec((tc, td), lambda i: (0, 0)),           # block-diag V_w^T
            pl.BlockSpec((1, td), lambda i: (0, 0)),            # tiled V_b
            pl.BlockSpec((td, T), lambda i: (0, 0)),            # block-diag w_w
            pl.BlockSpec(memory_space=pltpu.MemorySpace.SMEM),  # w_b scalar
            pl.BlockSpec((T, tc), lambda i: (0, 0)),            # attn expand matrix
            pl.BlockSpec((tc, c_out_p), lambda i: (0, 0)),      # tiled fc_w^T (padded)
            pl.BlockSpec((1, c_out_p), lambda i: (0, 0)),       # fc_b (padded)
        ],
        out_specs=pl.BlockSpec((b_blk, c_out_p), lambda i: (i, 0)),
    )

    out = pl.pallas_call(
        _attention_head_kernel,
        out_shape=jax.ShapeDtypeStruct((b_pad, c_out_p), jnp.float32),
        grid_spec=grid_spec,
        compiler_params=pltpu.CompilerParams(
            dimension_semantics=("parallel",),   # batch blocks -> both v7x TCs
            vmem_limit_bytes=vmem_limit,
        ),
    )(x_flat, packed.wbd, packed.vb_t, packed.rw, packed.wb,
      packed.expand, packed.fcw_t, packed.fcb)

    return out[:b, :c_out]


def _reference(x, params, n_tiles):
    vw, vb, ww, wb, fcw, fcb = params
    bn, c_in = x.shape
    h = x.reshape(-1, n_tiles, c_in)
    key = jnp.einsum('btc,dc->btd', h, vw) + vb
    logits = jnp.einsum('btd,od->bto', jnp.tanh(key), ww) + wb
    attn = jax.nn.softmax(logits, axis=1)
    pooled = jnp.einsum('btc,bto->bc', h, attn)
    return pooled @ fcw.T + fcb


def init_params(key, c_in, c_out):
    d = c_in // 2
    ks = jax.random.split(key, 6)

    def u(k, shape, fan_in):
        bound = 1.0 / jnp.sqrt(fan_in)
        return jax.random.uniform(k, shape, jnp.float32, -bound, bound)

    vw = u(ks[0], (d, c_in), c_in)
    vb = u(ks[1], (d,), c_in)
    ww = u(ks[2], (1, d), d)
    wb = u(ks[3], (1,), d)
    fcw = u(ks[4], (c_out, c_in), c_in)
    fcb = u(ks[5], (c_out,), c_in)
    return (vw, vb, ww, wb, fcw, fcb)


if __name__ == "__main__":
    key = jax.random.PRNGKey(0)
    kx, kp, kx2 = jax.random.split(key, 3)

    c_in, c_out, n_tiles = 32, 16, 8
    params = init_params(kp, c_in, c_out)

    # One-time weight packing, outside the per-call path.
    packed_f32 = prepare_params(params, n_tiles, use_bf16=False)
    packed_bf16 = prepare_params(params, n_tiles, use_bf16=True)   # default precision

    # Small batch: single block.
    b = 4
    x = jax.random.normal(kx, (b * n_tiles, c_in), jnp.float32)
    ref = _reference(x, params, n_tiles)

    out_f32 = jax.block_until_ready(attention_head_forward(x, packed_f32, c_out=c_out))
    assert out_f32.shape == (b, c_out)
    assert jnp.allclose(out_f32, ref, atol=2e-3, rtol=2e-3), "f32 mismatch (small)"

    out_bf16 = jax.block_until_ready(attention_head_forward(x, packed_bf16, c_out=c_out))
    assert out_bf16.shape == (b, c_out)
    assert jnp.allclose(out_bf16, ref, atol=5e-2, rtol=5e-2), "bf16 mismatch (small)"

    # Large batch: exercises the 2-block grid (v7x TC sharding) + tail zero-padding.
    b2 = 2500
    x2 = jax.random.normal(kx2, (b2 * n_tiles, c_in), jnp.float32)
    ref2 = _reference(x2, params, n_tiles)

    out2_f32 = jax.block_until_ready(attention_head_forward(x2, packed_f32, c_out=c_out))
    assert out2_f32.shape == (b2, c_out)
    assert jnp.allclose(out2_f32, ref2, atol=2e-3, rtol=2e-3), "f32 mismatch (large)"

    out2_bf16 = jax.block_until_ready(attention_head_forward(x2, packed_bf16, c_out=c_out))
    assert out2_bf16.shape == (b2, c_out)
    assert jnp.allclose(out2_bf16, ref2, atol=5e-2, rtol=5e-2), "bf16 mismatch (large)"

    print("KERNEL_OK")
</pallas_src>

<mosaic_0001>
module attributes {stable_mosaic.version = 11 : i64} {
  func.func @_attention_head_kernel(%arg0: i32, %arg1: memref<8x256xf32, #tpu.memory_space<vmem>>, %arg2: memref<256x128xf32, #tpu.memory_space<vmem>>, %arg3: memref<1x128xf32, #tpu.memory_space<vmem>>, %arg4: memref<128x8xf32, #tpu.memory_space<vmem>>, %arg5: memref<1xf32, #tpu.memory_space<smem>>, %arg6: memref<8x256xf32, #tpu.memory_space<vmem>>, %arg7: memref<256x128xf32, #tpu.memory_space<vmem>>, %arg8: memref<1x128xf32, #tpu.memory_space<vmem>>, %arg9: memref<8x128xf32, #tpu.memory_space<vmem>>) attributes {dimension_semantics = [#tpu.dimension_semantics<parallel>], iteration_bounds = array<i64: 1>, scalar_prefetch = 0 : i64, scratch_operands = 0 : i64, tpu.core_type = #tpu.core_type<tc>, window_params = [{transform_indices = @transform_0, window_bounds = array<i64: 8, 256>}, {pipeline_mode = #tpu.pipeline_mode<synchronous>, transform_indices = @transform_1, window_bounds = array<i64: 256, 128>}, {pipeline_mode = #tpu.pipeline_mode<synchronous>, transform_indices = @transform_2, window_bounds = array<i64: 1, 128>}, {pipeline_mode = #tpu.pipeline_mode<synchronous>, transform_indices = @transform_3, window_bounds = array<i64: 128, 8>}, {transform_indices = @transform_4, window_bounds = array<i64: 1>}, {pipeline_mode = #tpu.pipeline_mode<synchronous>, transform_indices = @transform_5, window_bounds = array<i64: 8, 256>}, {pipeline_mode = #tpu.pipeline_mode<synchronous>, transform_indices = @transform_6, window_bounds = array<i64: 256, 128>}, {pipeline_mode = #tpu.pipeline_mode<synchronous>, transform_indices = @transform_7, window_bounds = array<i64: 1, 128>}, {transform_indices = @transform_8, window_bounds = array<i64: 8, 128>}]} {
    %c0 = arith.constant 0 : index
    %c0_0 = arith.constant 0 : index
    %0 = vector.load %arg1[%c0, %c0_0] : memref<8x256xf32, #tpu.memory_space<vmem>>, vector<8x256xf32>
    %c0_1 = arith.constant 0 : index
    %c0_2 = arith.constant 0 : index
    %1 = vector.load %arg2[%c0_1, %c0_2] : memref<256x128xf32, #tpu.memory_space<vmem>>, vector<256x128xf32>
    %cst = arith.constant dense<0.000000e+00> : vector<8x128xf32>
    %2 = tpu.matmul %0, %1, %cst {dimension_numbers = #tpu.dot_dimension_numbers<[1], [0], [0], [1], [0, 0, 1, 1], [], []>} : vector<8x256xf32>, vector<256x128xf32>, vector<8x128xf32> -> vector<8x128xf32>
    %c0_3 = arith.constant 0 : index
    %c0_4 = arith.constant 0 : index
    %3 = vector.load %arg3[%c0_3, %c0_4] : memref<1x128xf32, #tpu.memory_space<vmem>>, vector<1x128xf32>
    %4 = vector.broadcast %3 : vector<1x128xf32> to vector<8x128xf32>
    %5 = arith.addf %2, %4 : vector<8x128xf32>
    %6 = math.tanh %5 : vector<8x128xf32>
    %c0_5 = arith.constant 0 : index
    %c0_6 = arith.constant 0 : index
    %7 = vector.load %arg4[%c0_5, %c0_6] : memref<128x8xf32, #tpu.memory_space<vmem>>, vector<128x8xf32>
    %cst_7 = arith.constant dense<0.000000e+00> : vector<8x8xf32>
    %8 = tpu.matmul %6, %7, %cst_7 {dimension_numbers = #tpu.dot_dimension_numbers<[1], [0], [0], [1], [0, 0, 1, 1], [], []>} : vector<8x128xf32>, vector<128x8xf32>, vector<8x8xf32> -> vector<8x8xf32>
    %c0_8 = arith.constant 0 : index
    %9 = memref.load %arg5[%c0_8] : memref<1xf32, #tpu.memory_space<smem>>
    %10 = vector.broadcast %9 : f32 to vector<8x8xf32>
    %11 = arith.addf %8, %10 : vector<8x8xf32>
    %cst_9 = arith.constant dense<0xFF800000> : vector<8xf32>
    %12 = vector.multi_reduction <maximumf>, %11, %cst_9 [1] : vector<8x8xf32> to vector<8xf32>
    %13 = vector.shape_cast %12 : vector<8xf32> to vector<8x1xf32>
    %14 = vector.broadcast %13 : vector<8x1xf32> to vector<8x8xf32>
    %15 = arith.subf %11, %14 : vector<8x8xf32>
    %16 = math.exp %15 : vector<8x8xf32>
    %cst_10 = arith.constant dense<0.000000e+00> : vector<8xf32>
    %17 = vector.multi_reduction <add>, %16, %cst_10 [1] : vector<8x8xf32> to vector<8xf32>
    %18 = vector.shape_cast %17 : vector<8xf32> to vector<8x1xf32>
    %19 = tpu.reciprocal %18 {approx = true} : vector<8x1xf32> -> vector<8x1xf32>
    %20 = vector.broadcast %19 : vector<8x1xf32> to vector<8x8xf32>
    %21 = arith.mulf %16, %20 : vector<8x8xf32>
    %c0_11 = arith.constant 0 : index
    %c0_12 = arith.constant 0 : index
    %22 = vector.load %arg6[%c0_11, %c0_12] : memref<8x256xf32, #tpu.memory_space<vmem>>, vector<8x256xf32>
    %cst_13 = arith.constant dense<0.000000e+00> : vector<8x256xf32>
    %23 = tpu.matmul %21, %22, %cst_13 {dimension_numbers = #tpu.dot_dimension_numbers<[1], [0], [0], [1], [0, 0, 1, 1], [], []>} : vector<8x8xf32>, vector<8x256xf32>, vector<8x256xf32> -> vector<8x256xf32>
    %24 = arith.mulf %23, %0 : vector<8x256xf32>
    %c0_14 = arith.constant 0 : index
    %c0_15 = arith.constant 0 : index
    %25 = vector.load %arg7[%c0_14, %c0_15] : memref<256x128xf32, #tpu.memory_space<vmem>>, vector<256x128xf32>
    %cst_16 = arith.constant dense<0.000000e+00> : vector<8x128xf32>
    %26 = tpu.matmul %24, %25, %cst_16 {dimension_numbers = #tpu.dot_dimension_numbers<[1], [0], [0], [1], [0, 0, 1, 1], [], []>} : vector<8x256xf32>, vector<256x128xf32>, vector<8x128xf32> -> vector<8x128xf32>
    %c0_17 = arith.constant 0 : index
    %c0_18 = arith.constant 0 : index
    %27 = vector.load %arg8[%c0_17, %c0_18] : memref<1x128xf32, #tpu.memory_space<vmem>>, vector<1x128xf32>
    %28 = vector.broadcast %27 : vector<1x128xf32> to vector<8x128xf32>
    %29 = arith.addf %26, %28 : vector<8x128xf32>
    %c0_19 = arith.constant 0 : index
    %c0_20 = arith.constant 0 : index
    %30 = vector.load %arg9[%c0_19, %c0_20] : memref<8x128xf32, #tpu.memory_space<vmem>>, vector<8x128xf32>
    tpu.vector_store %arg9[%c0_19, %c0_20], %29 {strides = array<i32>} : memref<8x128xf32, #tpu.memory_space<vmem>>, vector<8x128xf32>,
    return
  }
  func.func @transform_0(%arg0: i32) -> (i32, i32) {
    %c0_i32 = arith.constant 0 : i32
    %c0_i32_0 = arith.constant 0 : i32
    return %arg0, %c0_i32 : i32, i32
  }
  func.func @transform_1(%arg0: i32) -> (i32, i32) {
    %c0_i32 = arith.constant 0 : i32
    %c0_i32_0 = arith.constant 0 : i32
    %c0_i32_1 = arith.constant 0 : i32
    return %c0_i32, %c0_i32_0 : i32, i32
  }
  func.func @transform_2(%arg0: i32) -> (i32, i32) {
    %c0_i32 = arith.constant 0 : i32
    %c0_i32_0 = arith.constant 0 : i32
    %c0_i32_1 = arith.constant 0 : i32
    return %c0_i32, %c0_i32_0 : i32, i32
  }
  func.func @transform_3(%arg0: i32) -> (i32, i32) {
    %c0_i32 = arith.constant 0 : i32
    %c0_i32_0 = arith.constant 0 : i32
    %c0_i32_1 = arith.constant 0 : i32
    return %c0_i32, %c0_i32_0 : i32, i32
  }
  func.func @transform_4(%arg0: i32) -> i32 {
    %c0_i32 = arith.constant 0 : i32
    %c0_i32_0 = arith.constant 0 : i32
    return %c0_i32 : i32
  }
  func.func @transform_5(%arg0: i32) -> (i32, i32) {
    %c0_i32 = arith.constant 0 : i32
    %c0_i32_0 = arith.constant 0 : i32
    %c0_i32_1 = arith.constant 0 : i32
    return %c0_i32, %c0_i32_0 : i32, i32
  }
  func.func @transform_6(%arg0: i32) -> (i32, i32) {
    %c0_i32 = arith.constant 0 : i32
    %c0_i32_0 = arith.constant 0 : i32
    %c0_i32_1 = arith.constant 0 : i32
    return %c0_i32, %c0_i32_0 : i32, i32
  }
  func.func @transform_7(%arg0: i32) -> (i32, i32) {
    %c0_i32 = arith.constant 0 : i32
    %c0_i32_0 = arith.constant 0 : i32
    %c0_i32_1 = arith.constant 0 : i32
    return %c0_i32, %c0_i32_0 : i32, i32
  }
  func.func @transform_8(%arg0: i32) -> (i32, i32) {
    %c0_i32 = arith.constant 0 : i32
    %c0_i32_0 = arith.constant 0 : i32
    return %arg0, %c0_i32 : i32, i32
  }
}

</mosaic_0001>

<llo_original>
// kernel: attention_head_forward.1
$region0: #{attention_head_forward.1}
  #allocation0 [shape = 'u32[]', space=smem, size = 0x4, offset = 0x4, fixed_abs, tag = 'smem constant byte address 0x4 - core index']
  #allocation1 [shape = 'u32[144,128]{1,0:T(1,128)}', space=vmem, size = 0x12000, scoped, tag = 'internal scratch']
  #allocation2 [shape = 'f32[1]{0:T(128)S(6)}', space=smem, size = 0x200, scoped, tag = 'scoped memory for attention_head_forward.1']
  %s0 = inlined_call_operand.vmem [shape: f32[8,256], index: 0, kind: input, shape index: {}]
  %s1 = inlined_call_operand.hbm [shape: f32[256,128], index: 1, kind: input, shape index: {}]
  %s2 = inlined_call_operand.vmem [shape: f32[1,128], index: 2, kind: input, shape index: {}]
  %s3 = inlined_call_operand.vmem [shape: f32[128,8], index: 3, kind: input, shape index: {}]
  %s4 = inlined_call_operand.<no memory space> [shape: f32[1], index: 4, kind: input, shape index: {}]
  %s5 = inlined_call_operand.vmem [shape: f32[8,256], index: 5, kind: input, shape index: {}]
  %s6 = inlined_call_operand.hbm [shape: f32[256,128], index: 6, kind: input, shape index: {}]
  %s7 = inlined_call_operand.vmem [shape: f32[1,128], index: 7, kind: input, shape index: {}]
  %s8 = inlined_call_operand.vmem [shape: f32[8,128], index: 8, kind: output, shape index: {}]
  %s9 = sld [smem:[#allocation0]]
  $region50: #{attention_head_forward.1} parent=0
    _
  %s11 = ssub.s32 1, %s9
  %s12 = scalar_select 0, %s11, %s9
  %13 = sst [smem:[#allocation2]] %s4
  $region1: #{attention_head_forward.1} parent=0
    #allocation3 [shape = 'u8[131072]{0}', space=vmem, size = 0x20000, scoped, tag = 'input window, operand 1, single buffered']
    #allocation4 [shape = 's32[1]{0}', space=sflag, size = 0x4, scoped, tag = 'scoped memory for attention_head_forward.1']
    #allocation5 [shape = 'u8[131072]{0}', space=vmem, size = 0x20000, scoped, tag = 'input window, operand 6, single buffered']
    #allocation6 [shape = 's32[1]{0}', space=sflag, size = 0x4, scoped, tag = 'scoped memory for attention_head_forward.1']
    %14 = vsyncpa [#allocation4], 0
    %15 = vsyncpa [#allocation6], 0
    // Predicated region
    $region2: #{attention_head_forward.1} parent=1 // pred_check
      _
    $region3: #{attention_head_forward.1} parent=1 // pred_check_branch
      %17 = sbr.rel (0) target = $region5
    $region4: #{attention_head_forward.1} parent=1 // pred_region
      _
    $region5: #{attention_head_forward.1} parent=1 // pred_fallthru
      _
    // Predicated region
    $region6: #{attention_head_forward.1} parent=1 // pred_check
      _
    $region7: #{attention_head_forward.1} parent=1 // pred_check_branch
      %19 = sbr.rel (0) target = $region9
    $region8: #{attention_head_forward.1} parent=1 // pred_region
      %s21 = ssub.s32 4096, 4096
      %22 = vsyncadd [#allocation4], %s21
      %s23 = sshll.u32 [#allocation3], 4
      %s24 = int_to_ptr.vmem [resolvable:$true] %s23
      %29 = dma.hbm_to_vmem [thread:$0]  %s1, 4096, %s24, [#allocation4], 128, 128, 8
    $region9: #{attention_head_forward.1} parent=1 // pred_fallthru
      _
    // Predicated region
    $region10: #{attention_head_forward.1} parent=1 // pred_check
      _
    $region11: #{attention_head_forward.1} parent=1 // pred_check_branch
      %31 = sbr.rel (0) target = $region13
    $region12: #{attention_head_forward.1} parent=1 // pred_region
      _
    $region13: #{attention_head_forward.1} parent=1 // pred_fallthru
      _
    // Predicated region
    $region14: #{attention_head_forward.1} parent=1 // pred_check
      _
    $region15: #{attention_head_forward.1} parent=1 // pred_check_branch
      %33 = sbr.rel (0) target = $region17
    $region16: #{attention_head_forward.1} parent=1 // pred_region
      _
    $region17: #{attention_head_forward.1} parent=1 // pred_fallthru
      _
    // Predicated region
    $region18: #{attention_head_forward.1} parent=1 // pred_check
      _
    $region19: #{attention_head_forward.1} parent=1 // pred_check_branch
      %35 = sbr.rel (0) target = $region21
    $region20: #{attention_head_forward.1} parent=1 // pred_region
      _
    $region21: #{attention_head_forward.1} parent=1 // pred_fallthru
      _
    // Predicated region
    $region22: #{attention_head_forward.1} parent=1 // pred_check
      _
    $region23: #{attention_head_forward.1} parent=1 // pred_check_branch
      %37 = sbr.rel (0) target = $region25
    $region24: #{attention_head_forward.1} parent=1 // pred_region
      _
    $region25: #{attention_head_forward.1} parent=1 // pred_fallthru
      _
    // Predicated region
    $region26: #{attention_head_forward.1} parent=1 // pred_check
      _
    $region27: #{attention_head_forward.1} parent=1 // pred_check_branch
      %39 = sbr.rel (0) target = $region29
    $region28: #{attention_head_forward.1} parent=1 // pred_region
      %s41 = ssub.s32 4096, 4096
      %42 = vsyncadd [#allocation6], %s41
      %s43 = sshll.u32 [#allocation5], 4
      %s44 = int_to_ptr.vmem [resolvable:$true] %s43
      %49 = dma.hbm_to_vmem [thread:$0]  %s6, 4096, %s44, [#allocation6], 128, 128, 8
    $region29: #{attention_head_forward.1} parent=1 // pred_fallthru
      _
    // Predicated region
    $region30: #{attention_head_forward.1} parent=1 // pred_check
      _
    $region31: #{attention_head_forward.1} parent=1 // pred_check_branch
      %51 = sbr.rel (0) target = $region33
    $region32: #{attention_head_forward.1} parent=1 // pred_region
      _
    $region33: #{attention_head_forward.1} parent=1 // pred_fallthru
      _
    // Predicated region
    $region34: #{attention_head_forward.1} parent=1 // pred_check
      _
    $region35: #{attention_head_forward.1} parent=1 // pred_check_branch
      %53 = sbr.rel (0) target = $region37
    $region36: #{attention_head_forward.1} parent=1 // pred_region
      %54 = dma.done [#allocation4], 4096
    $region37: #{attention_head_forward.1} parent=1 // pred_fallthru
      _
    // Predicated region
    $region38: #{attention_head_forward.1} parent=1 // pred_check
      _
    $region39: #{attention_head_forward.1} parent=1 // pred_check_branch
      %56 = sbr.rel (0) target = $region41
    $region40: #{attention_head_forward.1} parent=1 // pred_region
      %57 = dma.done [#allocation6], 4096
    $region41: #{attention_head_forward.1} parent=1 // pred_fallthru
      _
    %v58 = vld [vmem:[%s0] sm:$0xff]
    %v59 = vld [vmem:[%s0 + $0x8] sm:$0xff]
    %v60 = vld [vmem:[#allocation3] sm:$0xff]
    %v61 = vld [vmem:[#allocation3 + $0x8] sm:$0xff]
    %v62 = vld [vmem:[#allocation3 + $0x10] sm:$0xff]
    %v63 = vld [vmem:[#allocation3 + $0x18] sm:$0xff]
    %v64 = vld [vmem:[#allocation3 + $0x20] sm:$0xff]
    %v65 = vld [vmem:[#allocation3 + $0x28] sm:$0xff]
    %v66 = vld [vmem:[#allocation3 + $0x30] sm:$0xff]
    %v67 = vld [vmem:[#allocation3 + $0x38] sm:$0xff]
    %v68 = vld [vmem:[#allocation3 + $0x40] sm:$0xff]
    %v69 = vld [vmem:[#allocation3 + $0x48] sm:$0xff]
    %v70 = vld [vmem:[#allocation3 + $0x50] sm:$0xff]
    %v71 = vld [vmem:[#allocation3 + $0x58] sm:$0xff]
    %v72 = vld [vmem:[#allocation3 + $0x60] sm:$0xff]
    %v73 = vld [vmem:[#allocation3 + $0x68] sm:$0xff]
    %v74 = vld [vmem:[#allocation3 + $0x70] sm:$0xff]
    %v75 = vld [vmem:[#allocation3 + $0x78] sm:$0xff]
    %v76 = vld [vmem:[#allocation3 + $0x80] sm:$0xff]
    %v77 = vld [vmem:[#allocation3 + $0x88] sm:$0xff]
    %v78 = vld [vmem:[#allocation3 + $0x90] sm:$0xff]
    %v79 = vld [vmem:[#allocation3 + $0x98] sm:$0xff]
    %v80 = vld [vmem:[#allocation3 + $0xa0] sm:$0xff]
    %v81 = vld [vmem:[#allocation3 + $0xa8] sm:$0xff]
    %v82 = vld [vmem:[#allocation3 + $0xb0] sm:$0xff]
    %v83 = vld [vmem:[#allocation3 + $0xb8] sm:$0xff]
    %v84 = vld [vmem:[#allocation3 + $0xc0] sm:$0xff]
    %v85 = vld [vmem:[#allocation3 + $0xc8] sm:$0xff]
    %v86 = vld [vmem:[#allocation3 + $0xd0] sm:$0xff]
    %v87 = vld [vmem:[#allocation3 + $0xd8] sm:$0xff]
    %v88 = vld [vmem:[#allocation3 + $0xe0] sm:$0xff]
    %v89 = vld [vmem:[#allocation3 + $0xe8] sm:$0xff]
    %v90 = vld [vmem:[#allocation3 + $0xf0] sm:$0xff]
    %v91 = vld [vmem:[#allocation3 + $0xf8] sm:$0xff]
    %v92 = vld [vmem:[%s2] sm:$0x1]
    %v94 = vlaneseq
    %v95 = vshrl.u32 %v94, 7
    %v96 = vsub.s32 0, %v95
    %v97 = vrot.slane %v92, %v96
    %99 = vmatprep.subr.mxu0 0.0
    %100 = vmatpush1.msra.mxu0 %v60
    %101 = vmatprep.subr.mxu0 0.0
    %102 = vmatpush1.msra.mxu0 %v61
    %103 = vmatprep.subr.mxu0 0.0
    %104 = vmatpush1.msra.mxu0 %v62
    %105 = vmatprep.subr.mxu0 0.0
    %106 = vmatpush1.msra.mxu0 %v63
    %107 = vmatprep.subr.mxu0 0.0
    %108 = vmatpush1.msra.mxu0 %v64
    %109 = vmatprep.subr.mxu0 0.0
    %110 = vmatpush1.msra.mxu0 %v65
    %111 = vmatprep.subr.mxu0 0.0
    %112 = vmatpush1.msra.mxu0 %v66
    %113 = vmatprep.subr.mxu0 0.0
    %114 = vmatpush1.msra.mxu0 %v67
    %115 = vmatprep.subr.mxu0 0.0
    %116 = vmatpush1.msra.mxu0 %v68
    %117 = vmatprep.subr.mxu0 0.0
    %118 = vmatpush1.msra.mxu0 %v69
    %119 = vmatprep.subr.mxu0 0.0
    %120 = vmatpush1.msra.mxu0 %v70
    %121 = vmatprep.subr.mxu0 0.0
    %122 = vmatpush1.msra.mxu0 %v71
    %123 = vmatprep.subr.mxu0 0.0
    %124 = vmatpush1.msra.mxu0 %v72
    %125 = vmatprep.subr.mxu0 0.0
    %126 = vmatpush1.msra.mxu0 %v73
    %127 = vmatprep.subr.mxu0 0.0
    %128 = vmatpush1.msra.mxu0 %v74
    %129 = vmatprep.subr.mxu0 0.0
    %130 = vmatpush1.msra.mxu0 %v75
    %131 = vmatprep.subr.mxu0 0.0
    %132 = vmatpush1.msra.mxu0 %v76
    %133 = vmatprep.subr.mxu0 0.0
    %134 = vmatpush1.msra.mxu0 %v77
    %135 = vmatprep.subr.mxu0 0.0
    %136 = vmatpush1.msra.mxu0 %v78
    %137 = vmatprep.subr.mxu0 0.0
    %138 = vmatpush1.msra.mxu0 %v79
    %139 = vmatprep.subr.mxu0 0.0
    %140 = vmatpush1.msra.mxu0 %v80
    %141 = vmatprep.subr.mxu0 0.0
    %142 = vmatpush1.msra.mxu0 %v81
    %143 = vmatprep.subr.mxu0 0.0
    %144 = vmatpush1.msra.mxu0 %v82
    %145 = vmatprep.subr.mxu0 0.0
    %146 = vmatpush1.msra.mxu0 %v83
    %147 = vmatprep.subr.mxu0 0.0
    %148 = vmatpush1.msra.mxu0 %v84
    %149 = vmatprep.subr.mxu0 0.0
    %150 = vmatpush1.msra.mxu0 %v85
    %151 = vmatprep.subr.mxu0 0.0
    %152 = vmatpush1.msra.mxu0 %v86
    %153 = vmatprep.subr.mxu0 0.0
    %154 = vmatpush1.msra.mxu0 %v87
    %155 = vmatprep.subr.mxu0 0.0
    %156 = vmatpush1.msra.mxu0 %v88
    %157 = vmatprep.subr.mxu0 0.0
    %158 = vmatpush1.msra.mxu0 %v89
    %159 = vmatprep.subr.mxu0 0.0
    %160 = vmatpush1.msra.mxu0 %v90
    %161 = vmatprep.subr.mxu0 0.0
    %162 = vmatpush1.msra.mxu0 %v91
    %163 = vmatprep.mubr.f32.mxu0 %v59
    %164 = vmatmul.mubr.f32.gmra.mrb[0].mxu0 %v58
    %v165 = vpop.f32.mrb[0].mxu0
    %v166 = vadd.f32 %v97, %v165
    %v167 = vpop.f32.mrb[0].mxu0
    %168 = vdwg.mxu0
    %v169 = vtanh.pop %v166
    %v170 = vld [vmem:[%s3] sm:$0xff]
    %v171 = vld [vmem:[%s3 + $0x8] sm:$0xff]
    %v172 = vld [vmem:[%s3 + $0x10] sm:$0xff]
    %v173 = vld [vmem:[%s3 + $0x18] sm:$0xff]
    %v174 = vld [vmem:[%s3 + $0x20] sm:$0xff]
    %v175 = vld [vmem:[%s3 + $0x28] sm:$0xff]
    %v176 = vld [vmem:[%s3 + $0x30] sm:$0xff]
    %v177 = vld [vmem:[%s3 + $0x38] sm:$0xff]
    %v178 = vld [vmem:[%s3 + $0x40] sm:$0xff]
    %v179 = vld [vmem:[%s3 + $0x48] sm:$0xff]
    %v180 = vld [vmem:[%s3 + $0x50] sm:$0xff]
    %v181 = vld [vmem:[%s3 + $0x58] sm:$0xff]
    %v182 = vld [vmem:[%s3 + $0x60] sm:$0xff]
    %v183 = vld [vmem:[%s3 + $0x68] sm:$0xff]
    %v184 = vld [vmem:[%s3 + $0x70] sm:$0xff]
    %v185 = vld [vmem:[%s3 + $0x78] sm:$0xff]
    %s186 = sld [smem:[#allocation2]]
    %v187 = vstv %s186
    %188 = vmatprep.subr.mxu0 0.0
    %189 = vmatpush1.msra.mxu0 %v170
    %190 = vmatprep.subr.mxu0 0.0
    %191 = vmatpush1.msra.mxu0 %v171
    %192 = vmatprep.subr.mxu0 0.0
    %193 = vmatpush1.msra.mxu0 %v172
    %194 = vmatprep.subr.mxu0 0.0
    %195 = vmatpush1.msra.mxu0 %v173
    %196 = vmatprep.subr.mxu0 0.0
    %197 = vmatpush1.msra.mxu0 %v174
    %198 = vmatprep.subr.mxu0 0.0
    %199 = vmatpush1.msra.mxu0 %v175
    %200 = vmatprep.subr.mxu0 0.0
    %201 = vmatpush1.msra.mxu0 %v176
    %202 = vmatprep.subr.mxu0 0.0
    %203 = vmatpush1.msra.mxu0 %v177
    %204 = vmatprep.subr.mxu0 0.0
    %205 = vmatpush1.msra.mxu0 %v178
    %206 = vmatprep.subr.mxu0 0.0
    %207 = vmatpush1.msra.mxu0 %v179
    %208 = vmatprep.subr.mxu0 0.0
    %209 = vmatpush1.msra.mxu0 %v180
    %210 = vmatprep.subr.mxu0 0.0
    %211 = vmatpush1.msra.mxu0 %v181
    %212 = vmatprep.subr.mxu0 0.0
    %213 = vmatpush1.msra.mxu0 %v182
    %214 = vmatprep.subr.mxu0 0.0
    %215 = vmatpush1.msra.mxu0 %v183
    %216 = vmatprep.subr.mxu0 0.0
    %217 = vmatpush1.msra.mxu0 %v184
    %218 = vmatprep.subr.mxu0 0.0
    %219 = vmatpush1.msra.mxu0 %v185
    %220 = vmatprep.subr.mxu0 0.0
    %221 = vmatpush1.msra.mxu0 0.0
    %222 = vmatprep.subr.mxu0 0.0
    %223 = vmatpush1.msra.mxu0 0.0
    %224 = vmatprep.subr.mxu0 0.0
    %225 = vmatpush1.msra.mxu0 0.0
    %226 = vmatprep.subr.mxu0 0.0
    %227 = vmatpush1.msra.mxu0 0.0
    %228 = vmatprep.subr.mxu0 0.0
    %229 = vmatpush1.msra.mxu0 0.0
    %230 = vmatprep.subr.mxu0 0.0
    %231 = vmatpush1.msra.mxu0 0.0
    %232 = vmatprep.subr.mxu0 0.0
    %233 = vmatpush1.msra.mxu0 0.0
    %234 = vmatprep.subr.mxu0 0.0
    %235 = vmatpush1.msra.mxu0 0.0
    %236 = vmatprep.subr.mxu0 0.0
    %237 = vmatpush1.msra.mxu0 0.0
    %238 = vmatprep.subr.mxu0 0.0
    %239 = vmatpush1.msra.mxu0 0.0
    %240 = vmatprep.subr.mxu0 0.0
    %241 = vmatpush1.msra.mxu0 0.0
    %242 = vmatprep.subr.mxu0 0.0
    %243 = vmatpush1.msra.mxu0 0.0
    %244 = vmatprep.subr.mxu0 0.0
    %245 = vmatpush1.msra.mxu0 0.0
    %246 = vmatprep.subr.mxu0 0.0
    %247 = vmatpush1.msra.mxu0 0.0
    %248 = vmatprep.subr.mxu0 0.0
    %249 = vmatpush1.msra.mxu0 0.0
    %250 = vmatprep.subr.mxu0 0.0
    %251 = vmatpush1.msra.mxu0 0.0
    %252 = vmatprep.mubr.f32.mxu0 0.0
    %253 = vmatmul.mubr.f32.gmra.mrb[0].mxu0 %v169
    %v254 = vpop.f32.mrb[0].mxu0
    %v255 = vadd.f32 %v187, %v254
    %v256 = vpop.f32.mrb[0].mxu0
    %257 = vdwg.mxu0
    %vm258 = vcmask 64512
    %v259 = vsel %vm258, %v255, -inf
    %260 = vmax.xlane.f32.xlu0 %v259
    %v261 = vpop.xlane.xlu0 %260
    %v262 = vsub.f32 %v255, %v261
    %v263 = vmul.f32 %v262, 1.442695
    %v264 = vpow.pop %v263
    %v265 = vsel %vm258, %v264, 0.0
    %266 = vadd.xlane.f32.xlu0 %v265
    %v267 = vpop.xlane.xlu0 %266
    %v268 = vrcp.pop %v267
    %v269 = vmul.f32 %v264, %v268
    %v270 = vld [vmem:[%s5] sm:$0xff]
    %v271 = vld [vmem:[%s5 + $0x8] sm:$0xff]
    %v273 = vsel %vm258, %v269, 0
    %275 = vmatprep.subr.mxu0 %v271
    %276 = vmatpush1.msra.mxu0 %v270
    %277 = vmatprep.subr.mxu0 0.0
    %278 = vmatpush1.msra.mxu0 0.0
    %279 = vmatprep.subr.mxu0 0.0
    %280 = vmatpush1.msra.mxu0 0.0
    %281 = vmatprep.subr.mxu0 0.0
    %282 = vmatpush1.msra.mxu0 0.0
    %283 = vmatprep.subr.mxu0 0.0
    %284 = vmatpush1.msra.mxu0 0.0
    %285 = vmatprep.subr.mxu0 0.0
    %286 = vmatpush1.msra.mxu0 0.0
    %287 = vmatprep.subr.mxu0 0.0
    %288 = vmatpush1.msra.mxu0 0.0
    %289 = vmatprep.subr.mxu0 0.0
    %290 = vmatpush1.msra.mxu0 0.0
    %291 = vmatprep.subr.mxu0 0.0
    %292 = vmatpush1.msra.mxu0 0.0
    %293 = vmatprep.subr.mxu0 0.0
    %294 = vmatpush1.msra.mxu0 0.0
    %295 = vmatprep.subr.mxu0 0.0
    %296 = vmatpush1.msra.mxu0 0.0
    %297 = vmatprep.subr.mxu0 0.0
    %298 = vmatpush1.msra.mxu0 0.0
    %299 = vmatprep.subr.mxu0 0.0
    %300 = vmatpush1.msra.mxu0 0.0
    %301 = vmatprep.subr.mxu0 0.0
    %302 = vmatpush1.msra.mxu0 0.0
    %303 = vmatprep.subr.mxu0 0.0
    %304 = vmatpush1.msra.mxu0 0.0
    %305 = vmatprep.subr.mxu0 0.0
    %306 = vmatpush1.msra.mxu0 0.0
    %307 = vmatprep.subr.mxu0 0.0
    %308 = vmatpush1.msra.mxu0 0.0
    %309 = vmatprep.subr.mxu0 0.0
    %310 = vmatpush1.msra.mxu0 0.0
    %311 = vmatprep.subr.mxu0 0.0
    %312 = vmatpush1.msra.mxu0 0.0
    %313 = vmatprep.subr.mxu0 0.0
    %314 = vmatpush1.msra.mxu0 0.0
    %315 = vmatprep.subr.mxu0 0.0
    %316 = vmatpush1.msra.mxu0 0.0
    %317 = vmatprep.subr.mxu0 0.0
    %318 = vmatpush1.msra.mxu0 0.0
    %319 = vmatprep.subr.mxu0 0.0
    %320 = vmatpush1.msra.mxu0 0.0
    %321 = vmatprep.subr.mxu0 0.0
    %322 = vmatpush1.msra.mxu0 0.0
    %323 = vmatprep.subr.mxu0 0.0
    %324 = vmatpush1.msra.mxu0 0.0
    %325 = vmatprep.subr.mxu0 0.0
    %326 = vmatpush1.msra.mxu0 0.0
    %327 = vmatprep.subr.mxu0 0.0
    %328 = vmatpush1.msra.mxu0 0.0
    %329 = vmatprep.subr.mxu0 0.0
    %330 = vmatpush1.msra.mxu0 0.0
    %331 = vmatprep.subr.mxu0 0.0
    %332 = vmatpush1.msra.mxu0 0.0
    %333 = vmatprep.subr.mxu0 0.0
    %334 = vmatpush1.msra.mxu0 0.0
    %335 = vmatprep.subr.mxu0 0.0
    %336 = vmatpush1.msra.mxu0 0.0
    %337 = vmatprep.subr.mxu0 0.0
    %338 = vmatpush1.msra.mxu0 0.0
    %339 = vmatprep.mubr.f32.mxu0 0.0
    %340 = vmatmul.mubr.f32.gmra.mrb[0].mxu0 %v273
    %v341 = vpop.f32.mrb[0].mxu0
    %v342 = vadd.f32 0.0, %v341
    %v343 = vpop.f32.mrb[0].mxu0
    %v344 = vadd.f32 0.0, %v343
    %345 = vdwg.mxu0
    %v346 = vmul.f32 %v342, %v58
    %v347 = vmul.f32 %v344, %v59
    %v348 = vld [vmem:[#allocation5] sm:$0xff]
    %v349 = vld [vmem:[#allocation5 + $0x8] sm:$0xff]
    %v350 = vld [vmem:[#allocation5 + $0x10] sm:$0xff]
    %v351 = vld [vmem:[#allocation5 + $0x18] sm:$0xff]
    %v352 = vld [vmem:[#allocation5 + $0x20] sm:$0xff]
    %v353 = vld [vmem:[#allocation5 + $0x28] sm:$0xff]
    %v354 = vld [vmem:[#allocation5 + $0x30] sm:$0xff]
    %v355 = vld [vmem:[#allocation5 + $0x38] sm:$0xff]
    %v356 = vld [vmem:[#allocation5 + $0x40] sm:$0xff]
    %v357 = vld [vmem:[#allocation5 + $0x48] sm:$0xff]
    %v358 = vld [vmem:[#allocation5 + $0x50] sm:$0xff]
    %v359 = vld [vmem:[#allocation5 + $0x58] sm:$0xff]
    %v360 = vld [vmem:[#allocation5 + $0x60] sm:$0xff]
    %v361 = vld [vmem:[#allocation5 + $0x68] sm:$0xff]
    %v362 = vld [vmem:[#allocation5 + $0x70] sm:$0xff]
    %v363 = vld [vmem:[#allocation5 + $0x78] sm:$0xff]
    %v364 = vld [vmem:[#allocation5 + $0x80] sm:$0xff]
    %v365 = vld [vmem:[#allocation5 + $0x88] sm:$0xff]
    %v366 = vld [vmem:[#allocation5 + $0x90] sm:$0xff]
    %v367 = vld [vmem:[#allocation5 + $0x98] sm:$0xff]
    %v368 = vld [vmem:[#allocation5 + $0xa0] sm:$0xff]
    %v369 = vld [vmem:[#allocation5 + $0xa8] sm:$0xff]
    %v370 = vld [vmem:[#allocation5 + $0xb0] sm:$0xff]
    %v371 = vld [vmem:[#allocation5 + $0xb8] sm:$0xff]
    %v372 = vld [vmem:[#allocation5 + $0xc0] sm:$0xff]
    %v373 = vld [vmem:[#allocation5 + $0xc8] sm:$0xff]
    %v374 = vld [vmem:[#allocation5 + $0xd0] sm:$0xff]
    %v375 = vld [vmem:[#allocation5 + $0xd8] sm:$0xff]
    %v376 = vld [vmem:[#allocation5 + $0xe0] sm:$0xff]
    %v377 = vld [vmem:[#allocation5 + $0xe8] sm:$0xff]
    %v378 = vld [vmem:[#allocation5 + $0xf0] sm:$0xff]
    %v379 = vld [vmem:[#allocation5 + $0xf8] sm:$0xff]
    %v380 = vld [vmem:[%s7] sm:$0x1]
    %v382 = vlaneseq
    %v383 = vshrl.u32 %v382, 7
    %v384 = vsub.s32 0, %v383
    %v385 = vrot.slane %v380, %v384
    %387 = vmatprep.subr.mxu0 0.0
    %388 = vmatpush1.msra.mxu0 %v348
    %389 = vmatprep.subr.mxu0 0.0
    %390 = vmatpush1.msra.mxu0 %v349
    %391 = vmatprep.subr.mxu0 0.0
    %392 = vmatpush1.msra.mxu0 %v350
    %393 = vmatprep.subr.mxu0 0.0
    %394 = vmatpush1.msra.mxu0 %v351
    %395 = vmatprep.subr.mxu0 0.0
    %396 = vmatpush1.msra.mxu0 %v352
    %397 = vmatprep.subr.mxu0 0.0
    %398 = vmatpush1.msra.mxu0 %v353
    %399 = vmatprep.subr.mxu0 0.0
    %400 = vmatpush1.msra.mxu0 %v354
    %401 = vmatprep.subr.mxu0 0.0
    %402 = vmatpush1.msra.mxu0 %v355
    %403 = vmatprep.subr.mxu0 0.0
    %404 = vmatpush1.msra.mxu0 %v356
    %405 = vmatprep.subr.mxu0 0.0
    %406 = vmatpush1.msra.mxu0 %v357
    %407 = vmatprep.subr.mxu0 0.0
    %408 = vmatpush1.msra.mxu0 %v358
    %409 = vmatprep.subr.mxu0 0.0
    %410 = vmatpush1.msra.mxu0 %v359
    %411 = vmatprep.subr.mxu0 0.0
    %412 = vmatpush1.msra.mxu0 %v360
    %413 = vmatprep.subr.mxu0 0.0
    %414 = vmatpush1.msra.mxu0 %v361
    %415 = vmatprep.subr.mxu0 0.0
    %416 = vmatpush1.msra.mxu0 %v362
    %417 = vmatprep.subr.mxu0 0.0
    %418 = vmatpush1.msra.mxu0 %v363
    %419 = vmatprep.subr.mxu0 0.0
    %420 = vmatpush1.msra.mxu0 %v364
    %421 = vmatprep.subr.mxu0 0.0
    %422 = vmatpush1.msra.mxu0 %v365
    %423 = vmatprep.subr.mxu0 0.0
    %424 = vmatpush1.msra.mxu0 %v366
    %425 = vmatprep.subr.mxu0 0.0
    %426 = vmatpush1.msra.mxu0 %v367
    %427 = vmatprep.subr.mxu0 0.0
    %428 = vmatpush1.msra.mxu0 %v368
    %429 = vmatprep.subr.mxu0 0.0
    %430 = vmatpush1.msra.mxu0 %v369
    %431 = vmatprep.subr.mxu0 0.0
    %432 = vmatpush1.msra.mxu0 %v370
    %433 = vmatprep.subr.mxu0 0.0
    %434 = vmatpush1.msra.mxu0 %v371
    %435 = vmatprep.subr.mxu0 0.0
    %436 = vmatpush1.msra.mxu0 %v372
    %437 = vmatprep.subr.mxu0 0.0
    %438 = vmatpush1.msra.mxu0 %v373
    %439 = vmatprep.subr.mxu0 0.0
    %440 = vmatpush1.msra.mxu0 %v374
    %441 = vmatprep.subr.mxu0 0.0
    %442 = vmatpush1.msra.mxu0 %v375
    %443 = vmatprep.subr.mxu0 0.0
    %444 = vmatpush1.msra.mxu0 %v376
    %445 = vmatprep.subr.mxu0 0.0
    %446 = vmatpush1.msra.mxu0 %v377
    %447 = vmatprep.subr.mxu0 0.0
    %448 = vmatpush1.msra.mxu0 %v378
    %449 = vmatprep.subr.mxu0 0.0
    %450 = vmatpush1.msra.mxu0 %v379
    %451 = vmatprep.mubr.f32.mxu0 %v347
    %452 = vmatmul.mubr.f32.gmra.mrb[0].mxu0 %v346
    %v453 = vpop.f32.mrb[0].mxu0
    %v454 = vadd.f32 %v385, %v453
    %v455 = vpop.f32.mrb[0].mxu0
    %456 = vdwg.mxu0
    %457 = vst [vmem:[%s8] sm:$0xff] %v454
    // Predicated region
    $region42: #{attention_head_forward.1} parent=1 // pred_check
      _
    $region43: #{attention_head_forward.1} parent=1 // pred_check_branch
      %459 = sbr.rel (0) target = $region45
    $region44: #{attention_head_forward.1} parent=1 // pred_region
      _
    $region45: #{attention_head_forward.1} parent=1 // pred_fallthru
      _
    // Predicated region
    $region46: #{attention_head_forward.1} parent=1 // pred_check
      _
    $region47: #{attention_head_forward.1} parent=1 // pred_check_branch
      %461 = sbr.rel (0) target = $region49
    $region48: #{attention_head_forward.1} parent=1 // pred_region
      _
    $region49: #{attention_head_forward.1} parent=1 // pred_fallthru
      _
    %462 = vsyncpa [#allocation4], 1
    %463 = vsyncpa [#allocation6], 1

</llo_original>
